<compile_context>
chip_gen: v5e
topology: v5e:2x2
jax: 0.10.0
libtpu: 0.0.40
codegen_flags: <defaults>
</compile_context>

<pallas_src>
import jax
import jax.numpy as jnp
from jax.experimental import pallas as pl
from jax.experimental.pallas import tpu as pltpu

# Small, consistent shapes.  NOTE: the reference feeds raw `state` into an
# LSTM built with input_size == hidden_size, and reuses fc1 on the LSTM
# output, so state_size must equal hidden_size for forward() to be valid.
STATE_SIZE = 32
HIDDEN_SIZE = 32
ACTION_SIZE = 4
BATCH = 2
TIME_STEP = 8
PAD_B = 8          # sublane-padded batch (f32 vreg has 8 sublanes)


def _qnetwork_kernel(x_ref,      # (T*8, S)  bf16 time-major states, rows B..7 zero
                     hc0_ref,    # (8, 2H)   f32  [:, :H]=h0, [:, H:]=c0
                     w_ref,      # (96, 128) bf16 packed weights (w_ih|w_hh|mlp)
                     b_ref,      # (8, 128)  f32  packed biases
                     out_ref):   # (8, 128)  f32  [q(32) | h(32) | c(32) | 0(32)]
    H = HIDDEN_SIZE
    Bp = PAD_B
    T = x_ref.shape[0] // Bp                   # static Python int

    # --- carve packed parameter slabs with static (free) slices ------------
    w_ih = w_ref[0:32, :]                      # (S, 4H)  bf16, gate order (i,f,g,o)
    w_hh = w_ref[32:64, :]                     # (H, 4H)  bf16
    w1   = w_ref[64:96, 0:32]                  # (S, H)   bf16  fc1
    w2   = w_ref[64:96, 32:64]                 # (H, H)   bf16  fc2
    w3p  = w_ref[64:96, 64:96]                 # (H, 32)  bf16  fc3, cols >= A are 0

    b_lstm = b_ref[0:1, :]                     # (1, 4H)  b_ih + b_hh folded
    b1     = b_ref[1:2, 0:H]                   # (1, H)
    b2     = b_ref[2:3, 0:H]                   # (1, H)
    b3p    = b_ref[3:4, 0:32]                  # (1, 32)  lanes >= A are 0

    # NOTE: reference computes `relu(self.fc1(state))` first and discards it;
    # it has no effect on outputs, so it is elided.

    # Hoisted input projection: no recurrent dependence, so all T steps'
    # x @ W_ih (+ bias) collapse into one (T*8, S) @ (S, 4H) MXU matmul.
    x_proj = jnp.dot(x_ref[...], w_ih,
                     preferred_element_type=jnp.float32) + b_lstm    # (T*8, 4H)

    # Register-resident recurrence carry (no VMEM scratch round-trips).
    h = hc0_ref[:, 0:H]                        # (8, H) f32
    c = hc0_ref[:, H:2 * H]                    # (8, H) f32

    # Statically unrolled recurrence so adjacent steps' MXU pushes / EUP pops /
    # VPU ops interleave; every slice below is (8, *) sublane-aligned.
    for t in range(T):
        gates = x_proj[t * Bp:(t + 1) * Bp, :] + jnp.dot(
            h.astype(jnp.bfloat16), w_hh,
            preferred_element_type=jnp.float32)                      # (8, 4H) f32
        # 2 EUP passes over the packed gates vreg instead of 4 sliced ones.
        sig = jax.nn.sigmoid(gates)
        tnh = jnp.tanh(gates)
        i_g = sig[:, 0 * H:1 * H]
        f_g = sig[:, 1 * H:2 * H]
        g_g = tnh[:, 2 * H:3 * H]
        o_g = sig[:, 3 * H:4 * H]
        c = f_g * c + i_g * g_g
        h = o_g * jnp.tanh(c)

    # --- MLP head epilogue: relu(fc1) -> relu(fc2) -> fc3 -------------------
    x1 = jnp.maximum(
        jnp.dot(h.astype(jnp.bfloat16), w1,
                preferred_element_type=jnp.float32) + b1, 0.0)
    # TODO(synk): self.fc2 is used in forward() but never defined in __init__
    # of the reference; materialized here as a deterministic (H, H) Linear.
    x2 = jnp.maximum(
        jnp.dot(x1.astype(jnp.bfloat16), w2,
                preferred_element_type=jnp.float32) + b2, 0.0)
    q32 = jnp.dot(x2.astype(jnp.bfloat16), w3p,
                  preferred_element_type=jnp.float32) + b3p           # (8, 32)

    # Single lane-dense (8, 128) store instead of 3 masked partial stores.
    out_ref[...] = jnp.concatenate(
        [q32, h, c, jnp.zeros((Bp, 32), jnp.float32)], axis=-1)


def pack_params(params):
    """One-time parameter packing (amortized across every forward call)."""
    S, H, A = STATE_SIZE, HIDDEN_SIZE, ACTION_SIZE
    w = jnp.zeros((96, 128), jnp.float32)
    w = w.at[0:S, :].set(params["w_ih"])
    w = w.at[32:32 + H, :].set(params["w_hh"])
    w = w.at[64:64 + S, 0:H].set(params["w1"])
    w = w.at[64:64 + H, 32:32 + H].set(params["w2"])
    w = w.at[64:64 + H, 64:64 + A].set(params["w3"])
    w = w.astype(jnp.bfloat16)                 # MXU operands in bf16

    b = jnp.zeros((8, 128), jnp.float32)       # biases stay f32 (added to f32 acc)
    b = b.at[0, :].set(params["b_lstm"][0])
    b = b.at[1, 0:H].set(params["b1"][0])
    b = b.at[2, 0:H].set(params["b2"][0])
    b = b.at[3, 0:A].set(params["b3"][0])
    return w, b


def qnetwork_forward(state, hidden_state, cell_state, packed):
    """state: (B, T, S); hidden_state/cell_state: (1, B, H) like PyTorch."""
    w_slab, b_slab = packed
    B, T, S = state.shape
    H = HIDDEN_SIZE
    A = ACTION_SIZE

    # Layout plumbing: time-major, batch padded to 8 sublanes, flattened, and
    # cast to bf16 so the MXU operand DMA is half-size.
    x_tmajor = jnp.transpose(state, (1, 0, 2))                       # (T, B, S)
    x_pad = jnp.zeros((T, PAD_B, S), state.dtype).at[:, :B, :].set(x_tmajor)
    x_flat = x_pad.reshape(T * PAD_B, S).astype(jnp.bfloat16)

    hc0 = jnp.zeros((PAD_B, 2 * H), jnp.float32)
    hc0 = hc0.at[:B, 0:H].set(hidden_state[0])
    hc0 = hc0.at[:B, H:2 * H].set(cell_state[0])

    vmem = pl.BlockSpec(memory_space=pltpu.MemorySpace.VMEM)
    flops = 2 * (T * PAD_B * S * 4 * H            # hoisted input projection
                 + T * PAD_B * H * 4 * H          # recurrence
                 + PAD_B * (S * H + H * H + H * 32))   # MLP head
    bytes_accessed = (x_flat.size * 2 + hc0.size * 4 + w_slab.size * 2
                      + b_slab.size * 4 + PAD_B * 128 * 4)
    out = pl.pallas_call(
        _qnetwork_kernel,
        out_shape=jax.ShapeDtypeStruct((PAD_B, 128), jnp.float32),
        in_specs=[vmem] * 4,
        out_specs=vmem,
        cost_estimate=pl.CostEstimate(
            flops=flops,
            transcendentals=T * PAD_B * (2 * 4 * H + H),
            bytes_accessed=bytes_accessed),
    )(x_flat, hc0, w_slab, b_slab)

    q = out[:B, 0:A]
    h_n = out[:B, 32:32 + H]
    c_n = out[:B, 64:64 + H]
    # Return (q, (h_n, c_n)) with PyTorch's (num_layers, B, H) convention.
    return q, (h_n[None], c_n[None])


def init_params(key, state_size=STATE_SIZE, hidden_size=HIDDEN_SIZE,
                action_size=ACTION_SIZE):
    ks = jax.random.split(key, 9)

    def kaiming(k, fan_in, shape):      # kaiming_normal_(nonlinearity='relu')
        return (jnp.sqrt(2.0 / fan_in)
                * jax.random.normal(k, shape)).astype(jnp.float32)

    def uniform(k, fan_in, shape):      # PyTorch default U(-1/sqrt(fan), +)
        bound = 1.0 / jnp.sqrt(jnp.float32(fan_in))
        return jax.random.uniform(k, shape, jnp.float32, -bound, bound)

    # fc1: Linear(state_size, hidden_size), kaiming per weight_init()
    w1 = kaiming(ks[0], state_size, (state_size, hidden_size))       # (in, out)
    b1 = uniform(ks[1], state_size, (1, hidden_size))
    # LSTM(input_size=hidden_size, hidden_size=hidden_size, num_layers=1)
    w_ih = uniform(ks[2], hidden_size, (state_size, 4 * hidden_size))
    w_hh = uniform(ks[3], hidden_size, (hidden_size, 4 * hidden_size))
    b_lstm = (uniform(ks[4], hidden_size, (1, 4 * hidden_size))      # b_ih
              + uniform(ks[5], hidden_size, (1, 4 * hidden_size)))   # + b_hh
    # fc2 (see TODO in kernel): Linear(hidden_size, hidden_size)
    w2 = uniform(ks[6], hidden_size, (hidden_size, hidden_size))
    b2 = jnp.zeros((1, hidden_size), jnp.float32)
    # fc3: Linear(hidden_size, action_size)
    w3 = uniform(ks[7], hidden_size, (hidden_size, action_size))
    b3 = uniform(ks[8], hidden_size, (1, action_size))
    return dict(w1=w1, b1=b1, w_ih=w_ih, w_hh=w_hh, b_lstm=b_lstm,
                w2=w2, b2=b2, w3=w3, b3=b3)


if __name__ == "__main__":
    key = jax.random.PRNGKey(0)
    kp, ksx = jax.random.split(key, 2)
    params = init_params(kp)
    packed = pack_params(params)           # packed once; reused across calls

    state = jax.random.normal(ksx, (BATCH, TIME_STEP, STATE_SIZE), jnp.float32)
    h0 = jnp.zeros((1, BATCH, HIDDEN_SIZE), jnp.float32)
    c0 = jnp.zeros((1, BATCH, HIDDEN_SIZE), jnp.float32)

    q, (h_n, c_n) = qnetwork_forward(state, h0, c0, packed)
    jax.block_until_ready((q, h_n, c_n))

    assert q.shape == (BATCH, ACTION_SIZE)
    assert h_n.shape == (1, BATCH, HIDDEN_SIZE)
    assert c_n.shape == (1, BATCH, HIDDEN_SIZE)
    assert bool(jnp.all(jnp.isfinite(q)))
    assert bool(jnp.all(jnp.isfinite(h_n))) and bool(jnp.all(jnp.isfinite(c_n)))
    print("KERNEL_OK")
</pallas_src>

<mosaic_0001>
module attributes {stable_mosaic.version = 11 : i64} {
  func.func @_qnetwork_kernel(%arg0: memref<64x32xbf16, #tpu.memory_space<vmem>>, %arg1: memref<8x64xf32, #tpu.memory_space<vmem>>, %arg2: memref<96x128xbf16, #tpu.memory_space<vmem>>, %arg3: memref<8x128xf32, #tpu.memory_space<vmem>>, %arg4: memref<8x128xf32, #tpu.memory_space<vmem>>) attributes {dimension_semantics = [], scalar_prefetch = 0 : i64, scratch_operands = 0 : i64, tpu.core_type = #tpu.core_type<tc>} {
    %c0 = arith.constant 0 : index
    %c0_0 = arith.constant 0 : index
    %0 = vector.load %arg2[%c0, %c0_0] : memref<96x128xbf16, #tpu.memory_space<vmem>>, vector<32x128xbf16>
    %c32 = arith.constant 32 : index
    %c0_1 = arith.constant 0 : index
    %1 = vector.load %arg2[%c32, %c0_1] : memref<96x128xbf16, #tpu.memory_space<vmem>>, vector<32x128xbf16>
    %c64 = arith.constant 64 : index
    %c0_2 = arith.constant 0 : index
    %2 = vector.load %arg2[%c64, %c0_2] : memref<96x128xbf16, #tpu.memory_space<vmem>>, vector<32x32xbf16>
    %c64_3 = arith.constant 64 : index
    %c32_4 = arith.constant 32 : index
    %3 = vector.load %arg2[%c64_3, %c32_4] : memref<96x128xbf16, #tpu.memory_space<vmem>>, vector<32x32xbf16>
    %c64_5 = arith.constant 64 : index
    %c64_6 = arith.constant 64 : index
    %4 = vector.load %arg2[%c64_5, %c64_6] : memref<96x128xbf16, #tpu.memory_space<vmem>>, vector<32x32xbf16>
    %c0_7 = arith.constant 0 : index
    %c0_8 = arith.constant 0 : index
    %5 = vector.load %arg3[%c0_7, %c0_8] : memref<8x128xf32, #tpu.memory_space<vmem>>, vector<1x128xf32>
    %c1 = arith.constant 1 : index
    %c0_9 = arith.constant 0 : index
    %6 = vector.load %arg3[%c1, %c0_9] : memref<8x128xf32, #tpu.memory_space<vmem>>, vector<1x32xf32>
    %c2 = arith.constant 2 : index
    %c0_10 = arith.constant 0 : index
    %7 = vector.load %arg3[%c2, %c0_10] : memref<8x128xf32, #tpu.memory_space<vmem>>, vector<1x32xf32>
    %c3 = arith.constant 3 : index
    %c0_11 = arith.constant 0 : index
    %8 = vector.load %arg3[%c3, %c0_11] : memref<8x128xf32, #tpu.memory_space<vmem>>, vector<1x32xf32>
    %c0_12 = arith.constant 0 : index
    %c0_13 = arith.constant 0 : index
    %9 = vector.load %arg0[%c0_12, %c0_13] : memref<64x32xbf16, #tpu.memory_space<vmem>>, vector<64x32xbf16>
    %cst = arith.constant dense<0.000000e+00> : vector<64x128xf32>
    %10 = tpu.matmul %9, %0, %cst {dimension_numbers = #tpu.dot_dimension_numbers<[1], [0], [0], [1], [0, 0, 1, 1], [], []>} : vector<64x32xbf16>, vector<32x128xbf16>, vector<64x128xf32> -> vector<64x128xf32>
    %11 = vector.broadcast %5 : vector<1x128xf32> to vector<64x128xf32>
    %12 = arith.addf %10, %11 : vector<64x128xf32>
    %c0_14 = arith.constant 0 : index
    %c0_15 = arith.constant 0 : index
    %13 = vector.load %arg1[%c0_14, %c0_15] : memref<8x64xf32, #tpu.memory_space<vmem>>, vector<8x32xf32>
    %c0_16 = arith.constant 0 : index
    %c32_17 = arith.constant 32 : index
    %14 = vector.load %arg1[%c0_16, %c32_17] : memref<8x64xf32, #tpu.memory_space<vmem>>, vector<8x32xf32>
    %15 = vector.extract_strided_slice %12 {offsets = [0, 0], sizes = [8, 128], strides = [1, 1]} : vector<64x128xf32> to vector<8x128xf32>
    %16 = arith.truncf %13 : vector<8x32xf32> to vector<8x32xbf16>
    %cst_18 = arith.constant dense<0.000000e+00> : vector<8x128xf32>
    %17 = tpu.matmul %16, %1, %cst_18 {dimension_numbers = #tpu.dot_dimension_numbers<[1], [0], [0], [1], [0, 0, 1, 1], [], []>} : vector<8x32xbf16>, vector<32x128xbf16>, vector<8x128xf32> -> vector<8x128xf32>
    %18 = arith.addf %15, %17 : vector<8x128xf32>
    %19 = arith.negf %18 : vector<8x128xf32>
    %20 = math.exp %19 : vector<8x128xf32>
    %cst_19 = arith.constant 1.000000e+00 : f32
    %21 = vector.broadcast %cst_19 : f32 to vector<8x128xf32>
    %22 = arith.addf %21, %20 : vector<8x128xf32>
    %23 = arith.divf %21, %22 : vector<8x128xf32>
    %24 = math.tanh %18 : vector<8x128xf32>
    %25 = vector.extract_strided_slice %23 {offsets = [0, 0], sizes = [8, 32], strides = [1, 1]} : vector<8x128xf32> to vector<8x32xf32>
    %26 = vector.extract_strided_slice %23 {offsets = [0, 32], sizes = [8, 32], strides = [1, 1]} : vector<8x128xf32> to vector<8x32xf32>
    %27 = vector.extract_strided_slice %24 {offsets = [0, 64], sizes = [8, 32], strides = [1, 1]} : vector<8x128xf32> to vector<8x32xf32>
    %28 = vector.extract_strided_slice %23 {offsets = [0, 96], sizes = [8, 32], strides = [1, 1]} : vector<8x128xf32> to vector<8x32xf32>
    %29 = arith.mulf %26, %14 : vector<8x32xf32>
    %30 = arith.mulf %25, %27 : vector<8x32xf32>
    %31 = arith.addf %29, %30 : vector<8x32xf32>
    %32 = math.tanh %31 : vector<8x32xf32>
    %33 = arith.mulf %28, %32 : vector<8x32xf32>
    %34 = vector.extract_strided_slice %12 {offsets = [8, 0], sizes = [8, 128], strides = [1, 1]} : vector<64x128xf32> to vector<8x128xf32>
    %35 = arith.truncf %33 : vector<8x32xf32> to vector<8x32xbf16>
    %cst_20 = arith.constant dense<0.000000e+00> : vector<8x128xf32>
    %36 = tpu.matmul %35, %1, %cst_20 {dimension_numbers = #tpu.dot_dimension_numbers<[1], [0], [0], [1], [0, 0, 1, 1], [], []>} : vector<8x32xbf16>, vector<32x128xbf16>, vector<8x128xf32> -> vector<8x128xf32>
    %37 = arith.addf %34, %36 : vector<8x128xf32>
    %38 = arith.negf %37 : vector<8x128xf32>
    %39 = math.exp %38 : vector<8x128xf32>
    %cst_21 = arith.constant 1.000000e+00 : f32
    %40 = vector.broadcast %cst_21 : f32 to vector<8x128xf32>
    %41 = arith.addf %40, %39 : vector<8x128xf32>
    %42 = arith.divf %40, %41 : vector<8x128xf32>
    %43 = math.tanh %37 : vector<8x128xf32>
    %44 = vector.extract_strided_slice %42 {offsets = [0, 0], sizes = [8, 32], strides = [1, 1]} : vector<8x128xf32> to vector<8x32xf32>
    %45 = vector.extract_strided_slice %42 {offsets = [0, 32], sizes = [8, 32], strides = [1, 1]} : vector<8x128xf32> to vector<8x32xf32>
    %46 = vector.extract_strided_slice %43 {offsets = [0, 64], sizes = [8, 32], strides = [1, 1]} : vector<8x128xf32> to vector<8x32xf32>
    %47 = vector.extract_strided_slice %42 {offsets = [0, 96], sizes = [8, 32], strides = [1, 1]} : vector<8x128xf32> to vector<8x32xf32>
    %48 = arith.mulf %45, %31 : vector<8x32xf32>
    %49 = arith.mulf %44, %46 : vector<8x32xf32>
    %50 = arith.addf %48, %49 : vector<8x32xf32>
    %51 = math.tanh %50 : vector<8x32xf32>
    %52 = arith.mulf %47, %51 : vector<8x32xf32>
    %53 = vector.extract_strided_slice %12 {offsets = [16, 0], sizes = [8, 128], strides = [1, 1]} : vector<64x128xf32> to vector<8x128xf32>
    %54 = arith.truncf %52 : vector<8x32xf32> to vector<8x32xbf16>
    %cst_22 = arith.constant dense<0.000000e+00> : vector<8x128xf32>
    %55 = tpu.matmul %54, %1, %cst_22 {dimension_numbers = #tpu.dot_dimension_numbers<[1], [0], [0], [1], [0, 0, 1, 1], [], []>} : vector<8x32xbf16>, vector<32x128xbf16>, vector<8x128xf32> -> vector<8x128xf32>
    %56 = arith.addf %53, %55 : vector<8x128xf32>
    %57 = arith.negf %56 : vector<8x128xf32>
    %58 = math.exp %57 : vector<8x128xf32>
    %cst_23 = arith.constant 1.000000e+00 : f32
    %59 = vector.broadcast %cst_23 : f32 to vector<8x128xf32>
    %60 = arith.addf %59, %58 : vector<8x128xf32>
    %61 = arith.divf %59, %60 : vector<8x128xf32>
    %62 = math.tanh %56 : vector<8x128xf32>
    %63 = vector.extract_strided_slice %61 {offsets = [0, 0], sizes = [8, 32], strides = [1, 1]} : vector<8x128xf32> to vector<8x32xf32>
    %64 = vector.extract_strided_slice %61 {offsets = [0, 32], sizes = [8, 32], strides = [1, 1]} : vector<8x128xf32> to vector<8x32xf32>
    %65 = vector.extract_strided_slice %62 {offsets = [0, 64], sizes = [8, 32], strides = [1, 1]} : vector<8x128xf32> to vector<8x32xf32>
    %66 = vector.extract_strided_slice %61 {offsets = [0, 96], sizes = [8, 32], strides = [1, 1]} : vector<8x128xf32> to vector<8x32xf32>
    %67 = arith.mulf %64, %50 : vector<8x32xf32>
    %68 = arith.mulf %63, %65 : vector<8x32xf32>
    %69 = arith.addf %67, %68 : vector<8x32xf32>
    %70 = math.tanh %69 : vector<8x32xf32>
    %71 = arith.mulf %66, %70 : vector<8x32xf32>
    %72 = vector.extract_strided_slice %12 {offsets = [24, 0], sizes = [8, 128], strides = [1, 1]} : vector<64x128xf32> to vector<8x128xf32>
    %73 = arith.truncf %71 : vector<8x32xf32> to vector<8x32xbf16>
    %cst_24 = arith.constant dense<0.000000e+00> : vector<8x128xf32>
    %74 = tpu.matmul %73, %1, %cst_24 {dimension_numbers = #tpu.dot_dimension_numbers<[1], [0], [0], [1], [0, 0, 1, 1], [], []>} : vector<8x32xbf16>, vector<32x128xbf16>, vector<8x128xf32> -> vector<8x128xf32>
    %75 = arith.addf %72, %74 : vector<8x128xf32>
    %76 = arith.negf %75 : vector<8x128xf32>
    %77 = math.exp %76 : vector<8x128xf32>
    %cst_25 = arith.constant 1.000000e+00 : f32
    %78 = vector.broadcast %cst_25 : f32 to vector<8x128xf32>
    %79 = arith.addf %78, %77 : vector<8x128xf32>
    %80 = arith.divf %78, %79 : vector<8x128xf32>
    %81 = math.tanh %75 : vector<8x128xf32>
    %82 = vector.extract_strided_slice %80 {offsets = [0, 0], sizes = [8, 32], strides = [1, 1]} : vector<8x128xf32> to vector<8x32xf32>
    %83 = vector.extract_strided_slice %80 {offsets = [0, 32], sizes = [8, 32], strides = [1, 1]} : vector<8x128xf32> to vector<8x32xf32>
    %84 = vector.extract_strided_slice %81 {offsets = [0, 64], sizes = [8, 32], strides = [1, 1]} : vector<8x128xf32> to vector<8x32xf32>
    %85 = vector.extract_strided_slice %80 {offsets = [0, 96], sizes = [8, 32], strides = [1, 1]} : vector<8x128xf32> to vector<8x32xf32>
    %86 = arith.mulf %83, %69 : vector<8x32xf32>
    %87 = arith.mulf %82, %84 : vector<8x32xf32>
    %88 = arith.addf %86, %87 : vector<8x32xf32>
    %89 = math.tanh %88 : vector<8x32xf32>
    %90 = arith.mulf %85, %89 : vector<8x32xf32>
    %91 = vector.extract_strided_slice %12 {offsets = [32, 0], sizes = [8, 128], strides = [1, 1]} : vector<64x128xf32> to vector<8x128xf32>
    %92 = arith.truncf %90 : vector<8x32xf32> to vector<8x32xbf16>
    %cst_26 = arith.constant dense<0.000000e+00> : vector<8x128xf32>
    %93 = tpu.matmul %92, %1, %cst_26 {dimension_numbers = #tpu.dot_dimension_numbers<[1], [0], [0], [1], [0, 0, 1, 1], [], []>} : vector<8x32xbf16>, vector<32x128xbf16>, vector<8x128xf32> -> vector<8x128xf32>
    %94 = arith.addf %91, %93 : vector<8x128xf32>
    %95 = arith.negf %94 : vector<8x128xf32>
    %96 = math.exp %95 : vector<8x128xf32>
    %cst_27 = arith.constant 1.000000e+00 : f32
    %97 = vector.broadcast %cst_27 : f32 to vector<8x128xf32>
    %98 = arith.addf %97, %96 : vector<8x128xf32>
    %99 = arith.divf %97, %98 : vector<8x128xf32>
    %100 = math.tanh %94 : vector<8x128xf32>
    %101 = vector.extract_strided_slice %99 {offsets = [0, 0], sizes = [8, 32], strides = [1, 1]} : vector<8x128xf32> to vector<8x32xf32>
    %102 = vector.extract_strided_slice %99 {offsets = [0, 32], sizes = [8, 32], strides = [1, 1]} : vector<8x128xf32> to vector<8x32xf32>
    %103 = vector.extract_strided_slice %100 {offsets = [0, 64], sizes = [8, 32], strides = [1, 1]} : vector<8x128xf32> to vector<8x32xf32>
    %104 = vector.extract_strided_slice %99 {offsets = [0, 96], sizes = [8, 32], strides = [1, 1]} : vector<8x128xf32> to vector<8x32xf32>
    %105 = arith.mulf %102, %88 : vector<8x32xf32>
    %106 = arith.mulf %101, %103 : vector<8x32xf32>
    %107 = arith.addf %105, %106 : vector<8x32xf32>
    %108 = math.tanh %107 : vector<8x32xf32>
    %109 = arith.mulf %104, %108 : vector<8x32xf32>
    %110 = vector.extract_strided_slice %12 {offsets = [40, 0], sizes = [8, 128], strides = [1, 1]} : vector<64x128xf32> to vector<8x128xf32>
    %111 = arith.truncf %109 : vector<8x32xf32> to vector<8x32xbf16>
    %cst_28 = arith.constant dense<0.000000e+00> : vector<8x128xf32>
    %112 = tpu.matmul %111, %1, %cst_28 {dimension_numbers = #tpu.dot_dimension_numbers<[1], [0], [0], [1], [0, 0, 1, 1], [], []>} : vector<8x32xbf16>, vector<32x128xbf16>, vector<8x128xf32> -> vector<8x128xf32>
    %113 = arith.addf %110, %112 : vector<8x128xf32>
    %114 = arith.negf %113 : vector<8x128xf32>
    %115 = math.exp %114 : vector<8x128xf32>
    %cst_29 = arith.constant 1.000000e+00 : f32
    %116 = vector.broadcast %cst_29 : f32 to vector<8x128xf32>
    %117 = arith.addf %116, %115 : vector<8x128xf32>
    %118 = arith.divf %116, %117 : vector<8x128xf32>
    %119 = math.tanh %113 : vector<8x128xf32>
    %120 = vector.extract_strided_slice %118 {offsets = [0, 0], sizes = [8, 32], strides = [1, 1]} : vector<8x128xf32> to vector<8x32xf32>
    %121 = vector.extract_strided_slice %118 {offsets = [0, 32], sizes = [8, 32], strides = [1, 1]} : vector<8x128xf32> to vector<8x32xf32>
    %122 = vector.extract_strided_slice %119 {offsets = [0, 64], sizes = [8, 32], strides = [1, 1]} : vector<8x128xf32> to vector<8x32xf32>
    %123 = vector.extract_strided_slice %118 {offsets = [0, 96], sizes = [8, 32], strides = [1, 1]} : vector<8x128xf32> to vector<8x32xf32>
    %124 = arith.mulf %121, %107 : vector<8x32xf32>
    %125 = arith.mulf %120, %122 : vector<8x32xf32>
    %126 = arith.addf %124, %125 : vector<8x32xf32>
    %127 = math.tanh %126 : vector<8x32xf32>
    %128 = arith.mulf %123, %127 : vector<8x32xf32>
    %129 = vector.extract_strided_slice %12 {offsets = [48, 0], sizes = [8, 128], strides = [1, 1]} : vector<64x128xf32> to vector<8x128xf32>
    %130 = arith.truncf %128 : vector<8x32xf32> to vector<8x32xbf16>
    %cst_30 = arith.constant dense<0.000000e+00> : vector<8x128xf32>
    %131 = tpu.matmul %130, %1, %cst_30 {dimension_numbers = #tpu.dot_dimension_numbers<[1], [0], [0], [1], [0, 0, 1, 1], [], []>} : vector<8x32xbf16>, vector<32x128xbf16>, vector<8x128xf32> -> vector<8x128xf32>
    %132 = arith.addf %129, %131 : vector<8x128xf32>
    %133 = arith.negf %132 : vector<8x128xf32>
    %134 = math.exp %133 : vector<8x128xf32>
    %cst_31 = arith.constant 1.000000e+00 : f32
    %135 = vector.broadcast %cst_31 : f32 to vector<8x128xf32>
    %136 = arith.addf %135, %134 : vector<8x128xf32>
    %137 = arith.divf %135, %136 : vector<8x128xf32>
    %138 = math.tanh %132 : vector<8x128xf32>
    %139 = vector.extract_strided_slice %137 {offsets = [0, 0], sizes = [8, 32], strides = [1, 1]} : vector<8x128xf32> to vector<8x32xf32>
    %140 = vector.extract_strided_slice %137 {offsets = [0, 32], sizes = [8, 32], strides = [1, 1]} : vector<8x128xf32> to vector<8x32xf32>
    %141 = vector.extract_strided_slice %138 {offsets = [0, 64], sizes = [8, 32], strides = [1, 1]} : vector<8x128xf32> to vector<8x32xf32>
    %142 = vector.extract_strided_slice %137 {offsets = [0, 96], sizes = [8, 32], strides = [1, 1]} : vector<8x128xf32> to vector<8x32xf32>
    %143 = arith.mulf %140, %126 : vector<8x32xf32>
    %144 = arith.mulf %139, %141 : vector<8x32xf32>
    %145 = arith.addf %143, %144 : vector<8x32xf32>
    %146 = math.tanh %145 : vector<8x32xf32>
    %147 = arith.mulf %142, %146 : vector<8x32xf32>
    %148 = vector.extract_strided_slice %12 {offsets = [56, 0], sizes = [8, 128], strides = [1, 1]} : vector<64x128xf32> to vector<8x128xf32>
    %149 = arith.truncf %147 : vector<8x32xf32> to vector<8x32xbf16>
    %cst_32 = arith.constant dense<0.000000e+00> : vector<8x128xf32>
    %150 = tpu.matmul %149, %1, %cst_32 {dimension_numbers = #tpu.dot_dimension_numbers<[1], [0], [0], [1], [0, 0, 1, 1], [], []>} : vector<8x32xbf16>, vector<32x128xbf16>, vector<8x128xf32> -> vector<8x128xf32>
    %151 = arith.addf %148, %150 : vector<8x128xf32>
    %152 = arith.negf %151 : vector<8x128xf32>
    %153 = math.exp %152 : vector<8x128xf32>
    %cst_33 = arith.constant 1.000000e+00 : f32
    %154 = vector.broadcast %cst_33 : f32 to vector<8x128xf32>
    %155 = arith.addf %154, %153 : vector<8x128xf32>
    %156 = arith.divf %154, %155 : vector<8x128xf32>
    %157 = math.tanh %151 : vector<8x128xf32>
    %158 = vector.extract_strided_slice %156 {offsets = [0, 0], sizes = [8, 32], strides = [1, 1]} : vector<8x128xf32> to vector<8x32xf32>
    %159 = vector.extract_strided_slice %156 {offsets = [0, 32], sizes = [8, 32], strides = [1, 1]} : vector<8x128xf32> to vector<8x32xf32>
    %160 = vector.extract_strided_slice %157 {offsets = [0, 64], sizes = [8, 32], strides = [1, 1]} : vector<8x128xf32> to vector<8x32xf32>
    %161 = vector.extract_strided_slice %156 {offsets = [0, 96], sizes = [8, 32], strides = [1, 1]} : vector<8x128xf32> to vector<8x32xf32>
    %162 = arith.mulf %159, %145 : vector<8x32xf32>
    %163 = arith.mulf %158, %160 : vector<8x32xf32>
    %164 = arith.addf %162, %163 : vector<8x32xf32>
    %165 = math.tanh %164 : vector<8x32xf32>
    %166 = arith.mulf %161, %165 : vector<8x32xf32>
    %167 = arith.truncf %166 : vector<8x32xf32> to vector<8x32xbf16>
    %cst_34 = arith.constant dense<0.000000e+00> : vector<8x32xf32>
    %168 = tpu.matmul %167, %2, %cst_34 {dimension_numbers = #tpu.dot_dimension_numbers<[1], [0], [0], [1], [0, 0, 1, 1], [], []>} : vector<8x32xbf16>, vector<32x32xbf16>, vector<8x32xf32> -> vector<8x32xf32>
    %169 = vector.broadcast %6 : vector<1x32xf32> to vector<8x32xf32>
    %170 = arith.addf %168, %169 : vector<8x32xf32>
    %cst_35 = arith.constant 0.000000e+00 : f32
    %171 = vector.broadcast %cst_35 : f32 to vector<8x32xf32>
    %172 = arith.maximumf %170, %171 : vector<8x32xf32>
    %173 = arith.truncf %172 : vector<8x32xf32> to vector<8x32xbf16>
    %cst_36 = arith.constant dense<0.000000e+00> : vector<8x32xf32>
    %174 = tpu.matmul %173, %3, %cst_36 {dimension_numbers = #tpu.dot_dimension_numbers<[1], [0], [0], [1], [0, 0, 1, 1], [], []>} : vector<8x32xbf16>, vector<32x32xbf16>, vector<8x32xf32> -> vector<8x32xf32>
    %175 = vector.broadcast %7 : vector<1x32xf32> to vector<8x32xf32>
    %176 = arith.addf %174, %175 : vector<8x32xf32>
    %cst_37 = arith.constant 0.000000e+00 : f32
    %177 = vector.broadcast %cst_37 : f32 to vector<8x32xf32>
    %178 = arith.maximumf %176, %177 : vector<8x32xf32>
    %179 = arith.truncf %178 : vector<8x32xf32> to vector<8x32xbf16>
    %cst_38 = arith.constant dense<0.000000e+00> : vector<8x32xf32>
    %180 = tpu.matmul %179, %4, %cst_38 {dimension_numbers = #tpu.dot_dimension_numbers<[1], [0], [0], [1], [0, 0, 1, 1], [], []>} : vector<8x32xbf16>, vector<32x32xbf16>, vector<8x32xf32> -> vector<8x32xf32>
    %181 = vector.broadcast %8 : vector<1x32xf32> to vector<8x32xf32>
    %182 = arith.addf %180, %181 : vector<8x32xf32>
    %cst_39 = arith.constant 0.000000e+00 : f32
    %183 = vector.broadcast %cst_39 : f32 to vector<8x32xf32>
    %184 = tpu.concatenate %182, %166, %164, %183 in 1 : vector<8x32xf32>, vector<8x32xf32>, vector<8x32xf32>, vector<8x32xf32> -> vector<8x128xf32>
    %c0_40 = arith.constant 0 : index
    %c0_41 = arith.constant 0 : index
    %185 = vector.load %arg4[%c0_40, %c0_41] : memref<8x128xf32, #tpu.memory_space<vmem>>, vector<8x128xf32>
    tpu.vector_store %arg4[%c0_40, %c0_41], %184 {strides = array<i32>} : memref<8x128xf32, #tpu.memory_space<vmem>>, vector<8x128xf32>,
    return
  }
}

</mosaic_0001>

<llo_original>
// kernel: tpu_custom_call.1
$region0: #{tpu_custom_call.1}
  #allocation0 [shape = 'u32[]', space=smem, size = 0x4, offset = 0x4, fixed_abs, tag = 'smem constant byte address 0x4 - core index']
  #allocation1 [shape = 'u32[72,128]{1,0:T(1,128)}', space=vmem, size = 0x9000, scoped, tag = 'internal scratch']
  %s0 = inlined_call_operand.vmem [shape: bf16[64,32], index: 0, kind: input, shape index: {}]
  %s1 = inlined_call_operand.hbm [shape: f32[8,64], index: 1, kind: input, shape index: {}]
  %s2 = inlined_call_operand.vmem [shape: bf16[96,128], index: 2, kind: input, shape index: {}]
  %s3 = inlined_call_operand.hbm [shape: f32[8,128], index: 3, kind: input, shape index: {}]
  %s4 = inlined_call_operand.hbm [shape: f32[8,128], index: 4, kind: output, shape index: {}]
  %s5 = sld [smem:[#allocation0]]
  $region34: #{tpu_custom_call.1} parent=0
    _
  %s7 = ssub.s32 1, %s5
  %s8 = scalar_select 0, %s7, %s5
  $region1: #{tpu_custom_call.1} parent=0
    #allocation2 [shape = 'u8[4096]{0}', space=vmem, size = 0x1000, scoped, tag = 'input window, operand 1, single buffered']
    #allocation3 [shape = 's32[1]{0}', space=sflag, size = 0x4, scoped, tag = 'scoped memory for tpu_custom_call.1']
    #allocation4 [shape = 's32[1]{0}', space=sflag, size = 0x4, scoped, tag = 'scoped memory for tpu_custom_call.1']
    #allocation5 [shape = 'u8[4096]{0}', space=vmem, size = 0x1000, scoped, tag = 'input window, operand 3, single buffered']
    #allocation6 [shape = 's32[1]{0}', space=sflag, size = 0x4, scoped, tag = 'scoped memory for tpu_custom_call.1']
    #allocation7 [shape = 'u8[4096]{0}', space=vmem, size = 0x1000, scoped, tag = 'output window, operand 0, single buffered']
    %9 = vsyncpa [#allocation3], 0
    %10 = vsyncpa [#allocation6], 0
    %11 = vsyncpa [#allocation4], 0
    // Predicated region
    $region2: #{tpu_custom_call.1} parent=1 // pred_check
      _
    $region3: #{tpu_custom_call.1} parent=1 // pred_check_branch
      %13 = sbr.rel (0) target = $region5
    $region4: #{tpu_custom_call.1} parent=1 // pred_region
      _
    $region5: #{tpu_custom_call.1} parent=1 // pred_fallthru
      _
    // Predicated region
    $region6: #{tpu_custom_call.1} parent=1 // pred_check
      _
    $region7: #{tpu_custom_call.1} parent=1 // pred_check_branch
      %15 = sbr.rel (0) target = $region9
    $region8: #{tpu_custom_call.1} parent=1 // pred_region
      %17 = vsyncadd [#allocation3], 0
      %s19 = sshll.u32 %s1, 4
      %s20 = int_to_ptr.hbm [resolvable:$true] %s19
      %s21 = sshll.u32 [#allocation2], 4
      %s22 = int_to_ptr.vmem [resolvable:$true] %s21
      %24 = dma.hbm_to_vmem [thread:$0]  %s20, 128, %s22, [#allocation3]
    $region9: #{tpu_custom_call.1} parent=1 // pred_fallthru
      _
    // Predicated region
    $region10: #{tpu_custom_call.1} parent=1 // pred_check
      _
    $region11: #{tpu_custom_call.1} parent=1 // pred_check_branch
      %26 = sbr.rel (0) target = $region13
    $region12: #{tpu_custom_call.1} parent=1 // pred_region
      _
    $region13: #{tpu_custom_call.1} parent=1 // pred_fallthru
      _
    // Predicated region
    $region14: #{tpu_custom_call.1} parent=1 // pred_check
      _
    $region15: #{tpu_custom_call.1} parent=1 // pred_check_branch
      %28 = sbr.rel (0) target = $region17
    $region16: #{tpu_custom_call.1} parent=1 // pred_region
      %30 = vsyncadd [#allocation6], 0
      %s32 = sshll.u32 %s3, 4
      %s33 = int_to_ptr.hbm [resolvable:$true] %s32
      %s34 = sshll.u32 [#allocation5], 4
      %s35 = int_to_ptr.vmem [resolvable:$true] %s34
      %37 = dma.hbm_to_vmem [thread:$0]  %s33, 128, %s35, [#allocation6]
    $region17: #{tpu_custom_call.1} parent=1 // pred_fallthru
      _
    // Predicated region
    $region18: #{tpu_custom_call.1} parent=1 // pred_check
      _
    $region19: #{tpu_custom_call.1} parent=1 // pred_check_branch
      %39 = sbr.rel (0) target = $region21
    $region20: #{tpu_custom_call.1} parent=1 // pred_region
      %41 = dma.done [#allocation3], 128
    $region21: #{tpu_custom_call.1} parent=1 // pred_fallthru
      _
    // Predicated region
    $region22: #{tpu_custom_call.1} parent=1 // pred_check
      _
    $region23: #{tpu_custom_call.1} parent=1 // pred_check_branch
      %43 = sbr.rel (0) target = $region25
    $region24: #{tpu_custom_call.1} parent=1 // pred_region
      %45 = dma.done [#allocation6], 128
    $region25: #{tpu_custom_call.1} parent=1 // pred_fallthru
      _
    %v47 = vld [vmem:[%s2] sm:$0xf]
    %v48 = vld [vmem:[%s2 + $0x4] sm:$0xf]
    %v49 = vld [vmem:[%s2 + $0x8] sm:$0xf]
    %v50 = vld [vmem:[%s2 + $0xc] sm:$0xf]
    %v51 = vld [vmem:[%s2 + $0x10] sm:$0xf]
    %v52 = vld [vmem:[%s2 + $0x14] sm:$0xf]
    %v53 = vld [vmem:[%s2 + $0x18] sm:$0xf]
    %v54 = vld [vmem:[%s2 + $0x1c] sm:$0xf]
    %v55 = vld [vmem:[%s2 + $0x20] sm:$0xf]
    %v56 = vld [vmem:[%s2 + $0x24] sm:$0xf]
    %v57 = vld [vmem:[%s2 + $0x28] sm:$0xf]
    %v58 = vld [vmem:[%s2 + $0x2c] sm:$0xf]
    %v59 = vld [vmem:[#allocation5] sm:$0x1]
    %v60 = vld [vmem:[#allocation5 + $0x1] sm:$0x1]
    %v61 = vld [vmem:[#allocation5 + $0x2] sm:$0x1]
    %v62 = vld [vmem:[#allocation5 + $0x3] sm:$0x1]
    %v63 = vld [vmem:[%s0] sm:$0xf]
    %v64 = vld [vmem:[%s0 + $0x4] sm:$0xf]
    %v65 = vld [vmem:[%s0 + $0x8] sm:$0xf]
    %v66 = vld [vmem:[%s0 + $0xc] sm:$0xf]
    %v67 = vld [vmem:[%s0 + $0x10] sm:$0xf]
    %v68 = vld [vmem:[%s0 + $0x14] sm:$0xf]
    %v69 = vld [vmem:[%s0 + $0x18] sm:$0xf]
    %v70 = vld [vmem:[%s0 + $0x1c] sm:$0xf]
    %v71 = vperm.slane %v59, 0
    %v80 = vunpack.c.l.b16 %v63
    %v81 = vunpack.c.l.b16 %v64
    %v82 = vunpack.c.l.b16 %v65
    %v83 = vunpack.c.l.b16 %v66
    %v84 = vunpack.c.l.b16 %v67
    %v85 = vunpack.c.l.b16 %v68
    %v86 = vunpack.c.l.b16 %v69
    %v87 = vunpack.c.l.b16 %v70
    %v88 = vpack.c.b16 %v81, %v80
    %v89 = vpack.c.b16 %v83, %v82
    %v90 = vpack.c.b16 %v85, %v84
    %v91 = vpack.c.b16 %v87, %v86
    %v96 = vunpack.c.l.b16 %v47
    %v97 = vunpack.c.l.b16 %v48
    %v98 = vunpack.c.l.b16 %v49
    %v99 = vunpack.c.l.b16 %v50
    %v100 = vpack.c.b16 %v97, %v96
    %v101 = vpack.c.b16 %v99, %v98
    %vm104 = vcmask 261120
    %v106 = vsel %vm104, %v88, 0
    %v109 = vsel %vm104, %v89, 0
    %v112 = vsel %vm104, %v90, 0
    %v115 = vsel %vm104, %v91, 0
    %117 = vmatpush.bf16.msra.mxu0 0
    %118 = vmatpush.bf16.msra.mxu0 0
    %119 = vmatpush.bf16.msra.mxu0 0
    %120 = vmatpush.bf16.msra.mxu0 0
    %121 = vmatpush.bf16.msra.mxu0 0
    %122 = vmatpush.bf16.msra.mxu0 0
    %123 = vmatpush.bf16.msra.mxu0 %v101
    %124 = vmatpush.bf16.msra.mxu0 %v100
    %125 = vmatmul.bf16.gmra.mxu0 %v106
    %v126 = vpop.f32.mrf.mxu0
    %v127 = vadd.f32 %v71, %v126
    %v128 = vpop.f32.mrf.mxu0
    %v129 = vadd.f32 %v71, %v128
    %130 = vmatmul.bf16.gmra.mxu0 %v109
    %v131 = vpop.f32.mrf.mxu0
    %v132 = vadd.f32 %v71, %v131
    %v133 = vpop.f32.mrf.mxu0
    %v134 = vadd.f32 %v71, %v133
    %135 = vmatmul.bf16.gmra.mxu0 %v112
    %v136 = vpop.f32.mrf.mxu0
    %v137 = vadd.f32 %v71, %v136
    %v138 = vpop.f32.mrf.mxu0
    %v139 = vadd.f32 %v71, %v138
    %140 = vmatmul.bf16.gmra.mxu0 %v115
    %v141 = vpop.f32.mrf.mxu0
    %v142 = vadd.f32 %v71, %v141
    %v143 = vpop.f32.mrf.mxu0
    %v144 = vadd.f32 %v71, %v143
    %145 = vdwg.mxu0
    %v146 = vld [vmem:[#allocation2] sm:$0xff]
    %v147 = vpack.c.bf16 %v146, %v146
    %v152 = vunpack.c.l.b16 %v51
    %v153 = vunpack.c.l.b16 %v52
    %v154 = vunpack.c.l.b16 %v53
    %v155 = vunpack.c.l.b16 %v54
    %v156 = vpack.c.b16 %v153, %v152
    %v157 = vpack.c.b16 %v155, %v154
    %v161 = vsel %vm104, %v147, 0
    %163 = vmatpush.bf16.msra.mxu0 0
    %164 = vmatpush.bf16.msra.mxu0 0
    %165 = vmatpush.bf16.msra.mxu0 0
    %166 = vmatpush.bf16.msra.mxu0 0
    %167 = vmatpush.bf16.msra.mxu0 0
    %168 = vmatpush.bf16.msra.mxu0 0
    %169 = vmatpush.bf16.msra.mxu0 %v157
    %170 = vmatpush.bf16.msra.mxu0 %v156
    %171 = vmatmul.bf16.gmra.mxu0 %v161
    %v172 = vpop.f32.mrf.mxu0
    %v173 = vadd.f32 0.0, %v172
    %v174 = vpop.f32.mrf.mxu0
    %175 = vdwg.mxu0
    %v176 = vadd.f32 %v127, %v173
    %v177 = vxor.u32 %v176, 2147483648
    %v178 = vmul.f32 %v177, 1.442695
    %v179 = vpow.pop %v178
    %v180 = vadd.f32 %v179, 1.0
    %v181 = vrcp.pop %v180
    %v182 = vmul.f32 %v180, %v181
    %v183 = vsub.f32 1.0, %v182
    %v184 = vmul.f32 %v181, %v183
    %v185 = vadd.f32 %v181, %v184
    %vm186 = vweird.f32 %v180
    %vm187 = vweird.f32 %v181
    %vm188 = vmor %vm186, %vm187
    %v189 = vsel %vm188, %v181, %v185
    %v190 = vand.u32 2147483647, %v180
    %vm191 = vcmp.eq.f32.partialorder %v190, 8.507059e+37
    %v192 = vand.u32 %v180, 2147483648
    %v193 = vor.u32 1.1754944e-38, %v192
    %v194 = vsel %vm191, %v193, %v189
    %v195 = vmul.f32 1.0, %v194
    %v196 = vtanh.pop %v176
    %v197 = vmul.f32 %v195, %v146
    %199 = vrot.lane.b32.xlu0 %v196, 64
    %v200 = vpop.permute.xlu0 %199
    %v202 = vmul.f32 %v195, %v200
    %204 = vrot.lane.b32.xlu0 %v202, 32
    %v205 = vpop.permute.xlu0 %204
    %v207 = vadd.f32 %v197, %v205
    %v208 = vtanh.pop %v207
    %210 = vrot.lane.b32.xlu0 %v208, 64
    %v211 = vpop.permute.xlu0 %210
    %v213 = vmul.f32 %v195, %v211
    %v214 = vpack.c.bf16 %v213, %v213
    %216 = vrot.lane.b32.xlu0 %v214, 32
    %v217 = vpop.permute.xlu0 %216
    %v219 = vsel %vm104, %v217, 0
    %221 = vmatpush.bf16.msra.mxu0 0
    %222 = vmatpush.bf16.msra.mxu0 0
    %223 = vmatpush.bf16.msra.mxu0 0
    %224 = vmatpush.bf16.msra.mxu0 0
    %225 = vmatpush.bf16.msra.mxu0 0
    %226 = vmatpush.bf16.msra.mxu0 0
    %227 = vmatpush.bf16.msra.mxu0 %v157
    %228 = vmatpush.bf16.msra.mxu0 %v156
    %229 = vmatmul.bf16.gmra.mxu0 %v219
    %v230 = vpop.f32.mrf.mxu0
    %v231 = vadd.f32 0.0, %v230
    %v232 = vpop.f32.mrf.mxu0
    %233 = vdwg.mxu0
    %v234 = vadd.f32 %v129, %v231
    %v235 = vxor.u32 %v234, 2147483648
    %v236 = vmul.f32 %v235, 1.442695
    %v237 = vpow.pop %v236
    %v238 = vadd.f32 %v237, 1.0
    %v239 = vrcp.pop %v238
    %v240 = vmul.f32 %v238, %v239
    %v241 = vsub.f32 1.0, %v240
    %v242 = vmul.f32 %v239, %v241
    %v243 = vadd.f32 %v239, %v242
    %vm244 = vweird.f32 %v238
    %vm245 = vweird.f32 %v239
    %vm246 = vmor %vm244, %vm245
    %v247 = vsel %vm246, %v239, %v243
    %v248 = vand.u32 2147483647, %v238
    %vm249 = vcmp.eq.f32.partialorder %v248, 8.507059e+37
    %v250 = vand.u32 %v238, 2147483648
    %v251 = vor.u32 1.1754944e-38, %v250
    %v252 = vsel %vm249, %v251, %v247
    %v253 = vmul.f32 1.0, %v252
    %v254 = vtanh.pop %v234
    %v255 = vmul.f32 %v253, %v207
    %257 = vrot.lane.b32.xlu0 %v254, 64
    %v258 = vpop.permute.xlu0 %257
    %v260 = vmul.f32 %v253, %v258
    %262 = vrot.lane.b32.xlu0 %v260, 32
    %v263 = vpop.permute.xlu0 %262
    %v265 = vadd.f32 %v255, %v263
    %v266 = vtanh.pop %v265
    %268 = vrot.lane.b32.xlu0 %v266, 64
    %v269 = vpop.permute.xlu0 %268
    %v271 = vmul.f32 %v253, %v269
    %v272 = vpack.c.bf16 %v271, %v271
    %274 = vrot.lane.b32.xlu0 %v272, 32
    %v275 = vpop.permute.xlu0 %274
    %v277 = vsel %vm104, %v275, 0
    %279 = vmatpush.bf16.msra.mxu0 0
    %280 = vmatpush.bf16.msra.mxu0 0
    %281 = vmatpush.bf16.msra.mxu0 0
    %282 = vmatpush.bf16.msra.mxu0 0
    %283 = vmatpush.bf16.msra.mxu0 0
    %284 = vmatpush.bf16.msra.mxu0 0
    %285 = vmatpush.bf16.msra.mxu0 %v157
    %286 = vmatpush.bf16.msra.mxu0 %v156
    %287 = vmatmul.bf16.gmra.mxu0 %v277
    %v288 = vpop.f32.mrf.mxu0
    %v289 = vadd.f32 0.0, %v288
    %v290 = vpop.f32.mrf.mxu0
    %291 = vdwg.mxu0
    %v292 = vadd.f32 %v132, %v289
    %v293 = vxor.u32 %v292, 2147483648
    %v294 = vmul.f32 %v293, 1.442695
    %v295 = vpow.pop %v294
    %v296 = vadd.f32 %v295, 1.0
    %v297 = vrcp.pop %v296
    %v298 = vmul.f32 %v296, %v297
    %v299 = vsub.f32 1.0, %v298
    %v300 = vmul.f32 %v297, %v299
    %v301 = vadd.f32 %v297, %v300
    %vm302 = vweird.f32 %v296
    %vm303 = vweird.f32 %v297
    %vm304 = vmor %vm302, %vm303
    %v305 = vsel %vm304, %v297, %v301
    %v306 = vand.u32 2147483647, %v296
    %vm307 = vcmp.eq.f32.partialorder %v306, 8.507059e+37
    %v308 = vand.u32 %v296, 2147483648
    %v309 = vor.u32 1.1754944e-38, %v308
    %v310 = vsel %vm307, %v309, %v305
    %v311 = vmul.f32 1.0, %v310
    %v312 = vtanh.pop %v292
    %v313 = vmul.f32 %v311, %v265
    %315 = vrot.lane.b32.xlu0 %v312, 64
    %v316 = vpop.permute.xlu0 %315
    %v318 = vmul.f32 %v311, %v316
    %320 = vrot.lane.b32.xlu0 %v318, 32
    %v321 = vpop.permute.xlu0 %320
    %v323 = vadd.f32 %v313, %v321
    %v324 = vtanh.pop %v323
    %326 = vrot.lane.b32.xlu0 %v324, 64
    %v327 = vpop.permute.xlu0 %326
    %v329 = vmul.f32 %v311, %v327
    %v330 = vpack.c.bf16 %v329, %v329
    %332 = vrot.lane.b32.xlu0 %v330, 32
    %v333 = vpop.permute.xlu0 %332
    %v335 = vsel %vm104, %v333, 0
    %337 = vmatpush.bf16.msra.mxu0 0
    %338 = vmatpush.bf16.msra.mxu0 0
    %339 = vmatpush.bf16.msra.mxu0 0
    %340 = vmatpush.bf16.msra.mxu0 0
    %341 = vmatpush.bf16.msra.mxu0 0
    %342 = vmatpush.bf16.msra.mxu0 0
    %343 = vmatpush.bf16.msra.mxu0 %v157
    %344 = vmatpush.bf16.msra.mxu0 %v156
    %345 = vmatmul.bf16.gmra.mxu0 %v335
    %v346 = vpop.f32.mrf.mxu0
    %v347 = vadd.f32 0.0, %v346
    %v348 = vpop.f32.mrf.mxu0
    %349 = vdwg.mxu0
    %v350 = vadd.f32 %v134, %v347
    %v351 = vxor.u32 %v350, 2147483648
    %v352 = vmul.f32 %v351, 1.442695
    %v353 = vpow.pop %v352
    %v354 = vadd.f32 %v353, 1.0
    %v355 = vrcp.pop %v354
    %v356 = vmul.f32 %v354, %v355
    %v357 = vsub.f32 1.0, %v356
    %v358 = vmul.f32 %v355, %v357
    %v359 = vadd.f32 %v355, %v358
    %vm360 = vweird.f32 %v354
    %vm361 = vweird.f32 %v355
    %vm362 = vmor %vm360, %vm361
    %v363 = vsel %vm362, %v355, %v359
    %v364 = vand.u32 2147483647, %v354
    %vm365 = vcmp.eq.f32.partialorder %v364, 8.507059e+37
    %v366 = vand.u32 %v354, 2147483648
    %v367 = vor.u32 1.1754944e-38, %v366
    %v368 = vsel %vm365, %v367, %v363
    %v369 = vmul.f32 1.0, %v368
    %v370 = vtanh.pop %v350
    %v371 = vmul.f32 %v369, %v323
    %373 = vrot.lane.b32.xlu0 %v370, 64
    %v374 = vpop.permute.xlu0 %373
    %v376 = vmul.f32 %v369, %v374
    %378 = vrot.lane.b32.xlu0 %v376, 32
    %v379 = vpop.permute.xlu0 %378
    %v381 = vadd.f32 %v371, %v379
    %v382 = vtanh.pop %v381
    %384 = vrot.lane.b32.xlu0 %v382, 64
    %v385 = vpop.permute.xlu0 %384
    %v387 = vmul.f32 %v369, %v385
    %v388 = vpack.c.bf16 %v387, %v387
    %390 = vrot.lane.b32.xlu0 %v388, 32
    %v391 = vpop.permute.xlu0 %390
    %v393 = vsel %vm104, %v391, 0
    %395 = vmatpush.bf16.msra.mxu0 0
    %396 = vmatpush.bf16.msra.mxu0 0
    %397 = vmatpush.bf16.msra.mxu0 0
    %398 = vmatpush.bf16.msra.mxu0 0
    %399 = vmatpush.bf16.msra.mxu0 0
    %400 = vmatpush.bf16.msra.mxu0 0
    %401 = vmatpush.bf16.msra.mxu0 %v157
    %402 = vmatpush.bf16.msra.mxu0 %v156
    %403 = vmatmul.bf16.gmra.mxu0 %v393
    %v404 = vpop.f32.mrf.mxu0
    %v405 = vadd.f32 0.0, %v404
    %v406 = vpop.f32.mrf.mxu0
    %407 = vdwg.mxu0
    %v408 = vadd.f32 %v137, %v405
    %v409 = vxor.u32 %v408, 2147483648
    %v410 = vmul.f32 %v409, 1.442695
    %v411 = vpow.pop %v410
    %v412 = vadd.f32 %v411, 1.0
    %v413 = vrcp.pop %v412
    %v414 = vmul.f32 %v412, %v413
    %v415 = vsub.f32 1.0, %v414
    %v416 = vmul.f32 %v413, %v415
    %v417 = vadd.f32 %v413, %v416
    %vm418 = vweird.f32 %v412
    %vm419 = vweird.f32 %v413
    %vm420 = vmor %vm418, %vm419
    %v421 = vsel %vm420, %v413, %v417
    %v422 = vand.u32 2147483647, %v412
    %vm423 = vcmp.eq.f32.partialorder %v422, 8.507059e+37
    %v424 = vand.u32 %v412, 2147483648
    %v425 = vor.u32 1.1754944e-38, %v424
    %v426 = vsel %vm423, %v425, %v421
    %v427 = vmul.f32 1.0, %v426
    %v428 = vtanh.pop %v408
    %v429 = vmul.f32 %v427, %v381
    %431 = vrot.lane.b32.xlu0 %v428, 64
    %v432 = vpop.permute.xlu0 %431
    %v434 = vmul.f32 %v427, %v432
    %436 = vrot.lane.b32.xlu0 %v434, 32
    %v437 = vpop.permute.xlu0 %436
    %v439 = vadd.f32 %v429, %v437
    %v440 = vtanh.pop %v439
    %442 = vrot.lane.b32.xlu0 %v440, 64
    %v443 = vpop.permute.xlu0 %442
    %v445 = vmul.f32 %v427, %v443
    %v446 = vpack.c.bf16 %v445, %v445
    %448 = vrot.lane.b32.xlu0 %v446, 32
    %v449 = vpop.permute.xlu0 %448
    %v451 = vsel %vm104, %v449, 0
    %453 = vmatpush.bf16.msra.mxu0 0
    %454 = vmatpush.bf16.msra.mxu0 0
    %455 = vmatpush.bf16.msra.mxu0 0
    %456 = vmatpush.bf16.msra.mxu0 0
    %457 = vmatpush.bf16.msra.mxu0 0
    %458 = vmatpush.bf16.msra.mxu0 0
    %459 = vmatpush.bf16.msra.mxu0 %v157
    %460 = vmatpush.bf16.msra.mxu0 %v156
    %461 = vmatmul.bf16.gmra.mxu0 %v451
    %v462 = vpop.f32.mrf.mxu0
    %v463 = vadd.f32 0.0, %v462
    %v464 = vpop.f32.mrf.mxu0
    %465 = vdwg.mxu0
    %v466 = vadd.f32 %v139, %v463
    %v467 = vxor.u32 %v466, 2147483648
    %v468 = vmul.f32 %v467, 1.442695
    %v469 = vpow.pop %v468
    %v470 = vadd.f32 %v469, 1.0
    %v471 = vrcp.pop %v470
    %v472 = vmul.f32 %v470, %v471
    %v473 = vsub.f32 1.0, %v472
    %v474 = vmul.f32 %v471, %v473
    %v475 = vadd.f32 %v471, %v474
    %vm476 = vweird.f32 %v470
    %vm477 = vweird.f32 %v471
    %vm478 = vmor %vm476, %vm477
    %v479 = vsel %vm478, %v471, %v475
    %v480 = vand.u32 2147483647, %v470
    %vm481 = vcmp.eq.f32.partialorder %v480, 8.507059e+37
    %v482 = vand.u32 %v470, 2147483648
    %v483 = vor.u32 1.1754944e-38, %v482
    %v484 = vsel %vm481, %v483, %v479
    %v485 = vmul.f32 1.0, %v484
    %v486 = vtanh.pop %v466
    %v487 = vmul.f32 %v485, %v439
    %489 = vrot.lane.b32.xlu0 %v486, 64
    %v490 = vpop.permute.xlu0 %489
    %v492 = vmul.f32 %v485, %v490
    %494 = vrot.lane.b32.xlu0 %v492, 32
    %v495 = vpop.permute.xlu0 %494
    %v497 = vadd.f32 %v487, %v495
    %v498 = vtanh.pop %v497
    %500 = vrot.lane.b32.xlu0 %v498, 64
    %v501 = vpop.permute.xlu0 %500
    %v503 = vmul.f32 %v485, %v501
    %v504 = vpack.c.bf16 %v503, %v503
    %506 = vrot.lane.b32.xlu0 %v504, 32
    %v507 = vpop.permute.xlu0 %506
    %v509 = vsel %vm104, %v507, 0
    %511 = vmatpush.bf16.msra.mxu0 0
    %512 = vmatpush.bf16.msra.mxu0 0
    %513 = vmatpush.bf16.msra.mxu0 0
    %514 = vmatpush.bf16.msra.mxu0 0
    %515 = vmatpush.bf16.msra.mxu0 0
    %516 = vmatpush.bf16.msra.mxu0 0
    %517 = vmatpush.bf16.msra.mxu0 %v157
    %518 = vmatpush.bf16.msra.mxu0 %v156
    %519 = vmatmul.bf16.gmra.mxu0 %v509
    %v520 = vpop.f32.mrf.mxu0
    %v521 = vadd.f32 0.0, %v520
    %v522 = vpop.f32.mrf.mxu0
    %523 = vdwg.mxu0
    %v524 = vadd.f32 %v142, %v521
    %v525 = vxor.u32 %v524, 2147483648
    %v526 = vmul.f32 %v525, 1.442695
    %v527 = vpow.pop %v526
    %v528 = vadd.f32 %v527, 1.0
    %v529 = vrcp.pop %v528
    %v530 = vmul.f32 %v528, %v529
    %v531 = vsub.f32 1.0, %v530
    %v532 = vmul.f32 %v529, %v531
    %v533 = vadd.f32 %v529, %v532
    %vm534 = vweird.f32 %v528
    %vm535 = vweird.f32 %v529
    %vm536 = vmor %vm534, %vm535
    %v537 = vsel %vm536, %v529, %v533
    %v538 = vand.u32 2147483647, %v528
    %vm539 = vcmp.eq.f32.partialorder %v538, 8.507059e+37
    %v540 = vand.u32 %v528, 2147483648
    %v541 = vor.u32 1.1754944e-38, %v540
    %v542 = vsel %vm539, %v541, %v537
    %v543 = vmul.f32 1.0, %v542
    %v544 = vtanh.pop %v524
    %v545 = vmul.f32 %v543, %v497
    %547 = vrot.lane.b32.xlu0 %v544, 64
    %v548 = vpop.permute.xlu0 %547
    %v550 = vmul.f32 %v543, %v548
    %552 = vrot.lane.b32.xlu0 %v550, 32
    %v553 = vpop.permute.xlu0 %552
    %v555 = vadd.f32 %v545, %v553
    %v556 = vtanh.pop %v555
    %558 = vrot.lane.b32.xlu0 %v556, 64
    %v559 = vpop.permute.xlu0 %558
    %v561 = vmul.f32 %v543, %v559
    %v562 = vpack.c.bf16 %v561, %v561
    %564 = vrot.lane.b32.xlu0 %v562, 32
    %v565 = vpop.permute.xlu0 %564
    %v567 = vsel %vm104, %v565, 0
    %569 = vmatpush.bf16.msra.mxu0 0
    %570 = vmatpush.bf16.msra.mxu0 0
    %571 = vmatpush.bf16.msra.mxu0 0
    %572 = vmatpush.bf16.msra.mxu0 0
    %573 = vmatpush.bf16.msra.mxu0 0
    %574 = vmatpush.bf16.msra.mxu0 0
    %575 = vmatpush.bf16.msra.mxu0 %v157
    %576 = vmatpush.bf16.msra.mxu0 %v156
    %577 = vmatmul.bf16.gmra.mxu0 %v567
    %v578 = vpop.f32.mrf.mxu0
    %v579 = vadd.f32 0.0, %v578
    %v580 = vpop.f32.mrf.mxu0
    %581 = vdwg.mxu0
    %v582 = vadd.f32 %v144, %v579
    %v583 = vxor.u32 %v582, 2147483648
    %v584 = vmul.f32 %v583, 1.442695
    %v585 = vpow.pop %v584
    %v586 = vadd.f32 %v585, 1.0
    %v587 = vrcp.pop %v586
    %v588 = vmul.f32 %v586, %v587
    %v589 = vsub.f32 1.0, %v588
    %v590 = vmul.f32 %v587, %v589
    %v591 = vadd.f32 %v587, %v590
    %vm592 = vweird.f32 %v586
    %vm593 = vweird.f32 %v587
    %vm594 = vmor %vm592, %vm593
    %v595 = vsel %vm594, %v587, %v591
    %v596 = vand.u32 2147483647, %v586
    %vm597 = vcmp.eq.f32.partialorder %v596, 8.507059e+37
    %v598 = vand.u32 %v586, 2147483648
    %v599 = vor.u32 1.1754944e-38, %v598
    %v600 = vsel %vm597, %v599, %v595
    %v601 = vmul.f32 1.0, %v600
    %v602 = vtanh.pop %v582
    %v603 = vmul.f32 %v601, %v555
    %605 = vrot.lane.b32.xlu0 %v602, 64
    %v606 = vpop.permute.xlu0 %605
    %v608 = vmul.f32 %v601, %v606
    %610 = vrot.lane.b32.xlu0 %v608, 32
    %v611 = vpop.permute.xlu0 %610
    %v613 = vadd.f32 %v603, %v611
    %v614 = vtanh.pop %v613
    %616 = vrot.lane.b32.xlu0 %v614, 64
    %v617 = vpop.permute.xlu0 %616
    %v619 = vmul.f32 %v601, %v617
    %v620 = vpack.c.bf16 %v619, %v619
    %v621 = vperm.slane %v60, 0
    %623 = vrot.lane.b32.xlu0 %v620, 32
    %v624 = vpop.permute.xlu0 %623
    %v629 = vunpack.c.l.b16 %v55
    %v630 = vunpack.c.l.b16 %v56
    %v631 = vunpack.c.l.b16 %v57
    %v632 = vunpack.c.l.b16 %v58
    %v633 = vpack.c.b16 %v630, %v629
    %v634 = vpack.c.b16 %v632, %v631
    %v638 = vsel %vm104, %v624, 0
    %640 = vmatpush.bf16.msra.mxu0 0
    %641 = vmatpush.bf16.msra.mxu0 0
    %642 = vmatpush.bf16.msra.mxu0 0
    %643 = vmatpush.bf16.msra.mxu0 0
    %644 = vmatpush.bf16.msra.mxu0 0
    %645 = vmatpush.bf16.msra.mxu0 0
    %646 = vmatpush.bf16.msra.mxu0 %v634
    %647 = vmatpush.bf16.msra.mxu0 %v633
    %648 = vmatmul.bf16.gmra.mxu0 %v638
    %v649 = vpop.f32.mrf.mxu0
    %v650 = vadd.f32 %v621, %v649
    %v651 = vpop.f32.mrf.mxu0
    %652 = vdwg.mxu0
    %v653 = vmax.f32 %v650, 0.0
    %v654 = vpack.c.bf16 %v653, %v653
    %v655 = vperm.slane %v61, 0
    %656 = vrot.lane.b32.xlu0 %v633, 96
    %v657 = vpop.permute.xlu0 %656
    %658 = vrot.lane.b32.xlu0 %v634, 96
    %v659 = vpop.permute.xlu0 %658
    %v663 = vsel %vm104, %v654, 0
    %665 = vmatpush.bf16.msra.mxu0 0
    %666 = vmatpush.bf16.msra.mxu0 0
    %667 = vmatpush.bf16.msra.mxu0 0
    %668 = vmatpush.bf16.msra.mxu0 0
    %669 = vmatpush.bf16.msra.mxu0 0
    %670 = vmatpush.bf16.msra.mxu0 0
    %671 = vmatpush.bf16.msra.mxu0 %v659
    %672 = vmatpush.bf16.msra.mxu0 %v657
    %673 = vmatmul.bf16.gmra.mxu0 %v663
    %v674 = vpop.f32.mrf.mxu0
    %v675 = vadd.f32 %v655, %v674
    %v676 = vpop.f32.mrf.mxu0
    %677 = vdwg.mxu0
    %v678 = vmax.f32 %v675, 0.0
    %v679 = vpack.c.bf16 %v678, %v678
    %v680 = vperm.slane %v62, 0
    %681 = vrot.lane.b32.xlu0 %v633, 64
    %v682 = vpop.permute.xlu0 %681
    %683 = vrot.lane.b32.xlu0 %v634, 64
    %v684 = vpop.permute.xlu0 %683
    %v688 = vsel %vm104, %v679, 0
    %690 = vmatpush.bf16.msra.mxu0 0
    %691 = vmatpush.bf16.msra.mxu0 0
    %692 = vmatpush.bf16.msra.mxu0 0
    %693 = vmatpush.bf16.msra.mxu0 0
    %694 = vmatpush.bf16.msra.mxu0 0
    %695 = vmatpush.bf16.msra.mxu0 0
    %696 = vmatpush.bf16.msra.mxu0 %v684
    %697 = vmatpush.bf16.msra.mxu0 %v682
    %698 = vmatmul.bf16.gmra.mxu0 %v688
    %v699 = vpop.f32.mrf.mxu0
    %v700 = vadd.f32 %v680, %v699
    %v701 = vpop.f32.mrf.mxu0
    %702 = vdwg.mxu0
    %704 = vrot.lane.b32.xlu0 %v619, 64
    %v705 = vpop.permute.xlu0 %704
    %708 = vrot.lane.b32.xlu0 %v613, 32
    %v709 = vpop.permute.xlu0 %708
    %v711 = vsel %vm104, %v700, %v705
    %vm712 = vcmask 523264
    %v713 = vsel %vm712, %v711, %v709
    %vm714 = vcmask 785408
    %v715 = vsel %vm714, %v713, 0.0
    %716 = vst [vmem:[#allocation7] sm:$0xff] %v715
    // Predicated region
    $region26: #{tpu_custom_call.1} parent=1 // pred_check
      _
    $region27: #{tpu_custom_call.1} parent=1 // pred_check_branch
      %718 = sbr.rel (0) target = $region29
    $region28: #{tpu_custom_call.1} parent=1 // pred_region
      %720 = vsyncadd [#allocation4], 0
      %s722 = sshll.u32 [#allocation7], 4
      %s723 = int_to_ptr.vmem [resolvable:$true] %s722
      %s724 = sshll.u32 %s4, 4
      %s725 = int_to_ptr.hbm [resolvable:$true] %s724
      %727 = dma.vmem_to_hbm [thread:$0]  %s723, 128, %s725, [#allocation4]
    $region29: #{tpu_custom_call.1} parent=1 // pred_fallthru
      _
    // Predicated region
    $region30: #{tpu_custom_call.1} parent=1 // pred_check
      _
    $region31: #{tpu_custom_call.1} parent=1 // pred_check_branch
      %729 = sbr.rel (0) target = $region33
    $region32: #{tpu_custom_call.1} parent=1 // pred_region
      %731 = dma.done [#allocation4], 128
    $region33: #{tpu_custom_call.1} parent=1 // pred_fallthru
      _
    %732 = vsyncpa [#allocation3], 1
    %733 = vsyncpa [#allocation6], 1
    %734 = vsyncpa [#allocation4], 1

</llo_original>
